<compile_context>
chip_gen: v5e
topology: v5e:2x2
jax: 0.10.0
libtpu: 0.0.40
codegen_flags: <defaults>
</compile_context>

<pallas_src>
from functools import partial

import jax
import jax.numpy as jnp
from jax import lax
from jax.experimental import pallas as pl
from jax.experimental.pallas import tpu as pltpu

LOG_STD_MIN = -1.609
LOG_STD_MAX = 5.0
RHO_LIMIT = 0.5
_LANE = 128


def _round_up(x, m):
    return ((x + m - 1) // m) * m


def _vmem_cap_bytes():
    """Generation-aware VMEM budget (leaves headroom for compiler scratch)."""
    cap = 128 << 20
    try:
        info_fn = getattr(pltpu, "get_tpu_info", None)
        if info_fn is not None:
            cap = int(info_fn().vmem_capacity_bytes)
    except Exception:
        pass
    if cap <= (64 << 20) + (8 << 20):   # v7x-class: 64 MiB physical VMEM
        return 48 << 20
    return 96 << 20                     # v5e/v6e-class: 128 MiB physical VMEM


def _pick_tile(b_pad128, bt_target):
    """Largest multiple-of-128 divisor of b_pad128 that is <= bt_target,
    preferring >= 2 tiles (dual-TC on v7x) when the batch allows it."""
    n = b_pad128 // _LANE
    best = 1
    for k in range(1, n + 1):
        if n % k == 0 and _LANE * k <= bt_target:
            best = k
    if best == n and n >= 2:            # force at least 2 grid tiles
        best = 1
        for k in range(1, n):
            if n % k == 0 and _LANE * k <= bt_target:
                best = k
    return _LANE * best


def _gmm_nll_kernel(scores_ref, trajs_ref, gt_ref, out_ref):
    # scores_ref: (M, Bt)        mode logits
    # trajs_ref:  (7, M, T, Bt)  x, y, z, log_std_x, log_std_y, log_std_z, rho
    # gt_ref:     (4, T, Bt)     gx, gy, gz, valid
    # out_ref:    (1, Bt)        per-sample loss (reg + cls)
    f32 = jnp.float32

    scores = scores_ref[...].astype(f32)            # (M, Bt)
    gx = gt_ref[0].astype(f32)                      # (T, Bt)
    gy = gt_ref[1].astype(f32)
    gz = gt_ref[2].astype(f32)
    valid = gt_ref[3].astype(f32)

    M, Bt = scores.shape

    def feat(i):                                    # (M, T, Bt), re-sliced from VMEM
        return trajs_ref[i].astype(f32)

    # ---- distance to GT per mode (accumulate squares; no live x/y/z copies) ----
    d = feat(0) - gx[None]
    dist2 = d * d
    d = feat(1) - gy[None]
    dist2 = dist2 + d * d
    d = feat(2) - gz[None]
    dist2 = dist2 + d * d
    dist = (jnp.sqrt(dist2) * valid[None]).sum(axis=1)            # (M, Bt)

    # ---- nearest mode: argmin over M, first-index tie-break, as one-hot ----
    min_d = dist.min(axis=0, keepdims=True)                       # (1, Bt)
    mode_iota = lax.broadcasted_iota(jnp.int32, (M, Bt), 0)       # (M, Bt)
    first_idx = jnp.min(
        jnp.where(dist <= min_d, mode_iota, M), axis=0, keepdims=True
    )                                                             # (1, Bt)
    onehot = (mode_iota == first_idx).astype(f32)                 # (M, Bt)

    def select(i):   # nearest mode's feature plane: (T, Bt)
        return (feat(i) * onehot[:, None, :]).sum(axis=0)

    nx, ny, nz = select(0), select(1), select(2)
    log_std_x = jnp.clip(select(3), LOG_STD_MIN, LOG_STD_MAX)
    log_std_y = jnp.clip(select(4), LOG_STD_MIN, LOG_STD_MAX)
    log_std_z = jnp.clip(select(5), LOG_STD_MIN, LOG_STD_MAX)
    rho = jnp.clip(select(6), -RHO_LIMIT, RHO_LIMIT)

    dx = gx - nx
    dy = gy - ny
    dz = gz - nz
    inv_sx = jnp.exp(-log_std_x)                    # division-free std handling
    inv_sy = jnp.exp(-log_std_y)
    inv_sz = jnp.exp(-log_std_z)

    one_minus_rho2 = 1.0 - rho * rho
    inv_omr2 = 1.0 / one_minus_rho2                 # single reciprocal per (T,Bt)
    log_coef_xy = log_std_x + log_std_y + 0.5 * jnp.log(one_minus_rho2)
    exp_xy = (0.5 * inv_omr2) * (
        dx * dx * inv_sx * inv_sx
        + dy * dy * inv_sy * inv_sy
        - 2.0 * rho * dx * dy * inv_sx * inv_sy
    )
    ez = dz * inv_sz
    exp_z = 0.5 * ez * ez

    reg_loss = ((log_coef_xy + exp_xy + log_std_z + exp_z) * valid).sum(
        axis=0, keepdims=True
    )                                                             # (1, Bt)

    # ---- cross-entropy of scores vs nearest mode ---------------------------
    smax = scores.max(axis=0, keepdims=True)                      # (1, Bt)
    lse = jnp.log(jnp.sum(jnp.exp(scores - smax), axis=0, keepdims=True)) + smax
    sel_score = (scores * onehot).sum(axis=0, keepdims=True)      # (1, Bt)
    loss_cls = lse - sel_score                                    # (1, Bt)

    out_ref[...] = reg_loss + loss_cls


@partial(jax.jit, static_argnames=("block_b",))
def criterion_loss(pred_scores, pred_trajs, gt_trajs,
                   center_gt_final_valid_idx=None, *, block_b=4096):
    """Pallas version of Criterion.forward (center_gt_final_valid_idx unused)."""
    del center_gt_final_valid_idx  # unused by the reference module as well
    B, M, T, F_ = pred_trajs.shape
    assert F_ == 7, "full GMM expects 7 features (x,y,z,lsx,lsy,lsz,rho)"
    assert gt_trajs.shape == (B, T, 4)

    traj_isz = jnp.dtype(pred_trajs.dtype).itemsize
    gt_isz = jnp.dtype(gt_trajs.dtype).itemsize
    sc_isz = jnp.dtype(pred_scores.dtype).itemsize

    # ---- tile sizing from a generation-aware VMEM budget --------------------
    vmem_cap = _vmem_cap_bytes()
    # per-lane bytes: double-buffered native-dtype inputs + f32 temporaries
    per_lane_in = 2 * (7 * M * T * traj_isz + 4 * T * gt_isz + M * sc_isz)
    per_lane_tmp = 4 * (4 * M * T + 16 * T + 6 * M + 8)
    per_lane = per_lane_in + per_lane_tmp + 2 * 4
    bt_budget = max(_LANE, (vmem_cap // per_lane) // _LANE * _LANE)
    bt_target = max(_LANE, min(int(block_b), int(bt_budget), 8192) // _LANE * _LANE)

    # ---- minimal lane padding (<=127) and divisor tile ----------------------
    b_pad = _round_up(B, _LANE)
    bt = _pick_tile(b_pad, bt_target)
    n_tiles = b_pad // bt
    pad = b_pad - B

    # Lane-dense layout: batch on the minor (128-lane) axis; native dtype kept.
    # Under jit the transpose + pad fuse into one materialization pass.
    scores_t = jnp.transpose(pred_scores, (1, 0))          # (M, B)
    trajs_t = jnp.transpose(pred_trajs, (3, 1, 2, 0))      # (7, M, T, B)
    gt_t = jnp.transpose(gt_trajs, (2, 1, 0))              # (4, T, B)
    if pad:
        scores_t = jnp.pad(scores_t, ((0, 0), (0, pad)))
        trajs_t = jnp.pad(trajs_t, ((0, 0), (0, 0), (0, 0), (0, pad)))
        gt_t = jnp.pad(gt_t, ((0, 0), (0, 0), (0, pad)))

    bytes_accessed = (
        7 * M * T * b_pad * traj_isz
        + 4 * T * b_pad * gt_isz
        + M * b_pad * sc_isz
        + b_pad * 4
    )
    cost = pl.CostEstimate(
        flops=40 * b_pad * M * T,
        transcendentals=b_pad * M * T + 8 * b_pad * T + b_pad * M,
        bytes_accessed=bytes_accessed,
    )

    out = pl.pallas_call(
        _gmm_nll_kernel,
        out_shape=jax.ShapeDtypeStruct((1, b_pad), jnp.float32),
        grid=(n_tiles,),
        in_specs=[
            pl.BlockSpec((M, bt), lambda i: (0, i)),
            pl.BlockSpec((7, M, T, bt), lambda i: (0, 0, 0, i)),
            pl.BlockSpec((4, T, bt), lambda i: (0, 0, i)),
        ],
        out_specs=pl.BlockSpec((1, bt), lambda i: (0, i)),
        compiler_params=pltpu.CompilerParams(
            dimension_semantics=("parallel",),
            vmem_limit_bytes=int(vmem_cap),
        ),
        cost_estimate=cost,
    )(scores_t, trajs_t, gt_t)

    per_sample = out[0, :B]          # drop lane padding before the mean
    return jnp.mean(per_sample)


# ---------------------------- pure-JAX reference ---------------------------
def criterion_ref(pred_scores, pred_trajs, gt_trajs):
    valid = gt_trajs[..., -1]
    dist = jnp.linalg.norm(pred_trajs[..., :3] - gt_trajs[:, None, :, :3], axis=-1)
    dist = (dist * valid[:, None, :]).sum(-1)
    nearest = jnp.argmin(dist, axis=-1)
    nt = pred_trajs[jnp.arange(pred_trajs.shape[0]), nearest]
    res = gt_trajs[..., :3] - nt[..., :3]
    dx, dy, dz = res[..., 0], res[..., 1], res[..., 2]
    lsx = jnp.clip(nt[..., 3], LOG_STD_MIN, LOG_STD_MAX)
    lsy = jnp.clip(nt[..., 4], LOG_STD_MIN, LOG_STD_MAX)
    lsz = jnp.clip(nt[..., 5], LOG_STD_MIN, LOG_STD_MAX)
    rho = jnp.clip(nt[..., 6], -RHO_LIMIT, RHO_LIMIT)
    sx, sy, sz = jnp.exp(lsx), jnp.exp(lsy), jnp.exp(lsz)
    lcxy = lsx + lsy + 0.5 * jnp.log(1 - rho ** 2)
    exy = 0.5 / (1 - rho ** 2) * (
        dx ** 2 / sx ** 2 + dy ** 2 / sy ** 2 - 2 * rho * dx * dy / (sx * sy)
    )
    ez = 0.5 * (dz / sz) ** 2
    reg = ((lcxy + exy + lsz + ez) * valid).sum(-1)
    lse = jax.nn.logsumexp(pred_scores, axis=-1)
    loss_cls = lse - jnp.take_along_axis(pred_scores, nearest[:, None], axis=1)[:, 0]
    return jnp.mean(reg + loss_cls)


if __name__ == "__main__":
    key = jax.random.PRNGKey(0)

    def make_inputs(key, B, M, T):
        k1, k2, k3, k4 = jax.random.split(key, 4)
        pred_scores = jax.random.normal(k1, (B, M), dtype=jnp.float32)
        pred_trajs = jax.random.normal(k2, (B, M, T, 7), dtype=jnp.float32)
        gt_xyz = jax.random.normal(k3, (B, T, 3), dtype=jnp.float32)
        gt_valid = (jax.random.uniform(k4, (B, T)) > 0.2).astype(jnp.float32)
        gt_trajs = jnp.concatenate([gt_xyz, gt_valid[..., None]], axis=-1)
        return pred_scores, pred_trajs, gt_trajs

    # Small shapes consistent with the module: batch=2, modes=6, timestamps=8.
    ka, kb = jax.random.split(key)
    ps, pt, gt = make_inputs(ka, B=2, M=6, T=8)
    cgfvi = jnp.zeros((2,), dtype=jnp.int32)  # unused by the reference module
    loss = jax.block_until_ready(criterion_loss(ps, pt, gt, cgfvi))
    ref = jax.block_until_ready(criterion_ref(ps, pt, gt))
    assert jnp.allclose(loss, ref, rtol=2e-5, atol=1e-5), (loss, ref)

    # Odd shapes (exercise lane padding on the batch axis).
    ps2, pt2, gt2 = make_inputs(kb, B=5, M=4, T=12)
    loss2 = jax.block_until_ready(criterion_loss(ps2, pt2, gt2))
    ref2 = jax.block_until_ready(criterion_ref(ps2, pt2, gt2))
    assert jnp.allclose(loss2, ref2, rtol=2e-5, atol=1e-5), (loss2, ref2)

    print("KERNEL_OK")
</pallas_src>

<mosaic_0001>
module attributes {stable_mosaic.version = 11 : i64} {
  func.func @_gmm_nll_kernel(%arg0: i32, %arg1: memref<6x128xf32, #tpu.memory_space<vmem>>, %arg2: memref<7x6x8x128xf32, #tpu.memory_space<vmem>>, %arg3: memref<4x8x128xf32, #tpu.memory_space<vmem>>, %arg4: memref<1x128xf32, #tpu.memory_space<vmem>>) attributes {dimension_semantics = [#tpu.dimension_semantics<parallel>], iteration_bounds = array<i64: 1>, scalar_prefetch = 0 : i64, scratch_operands = 0 : i64, tpu.core_type = #tpu.core_type<tc>, window_params = [{transform_indices = @transform_0, window_bounds = array<i64: 6, 128>}, {transform_indices = @transform_1, window_bounds = array<i64: 7, 6, 8, 128>}, {transform_indices = @transform_2, window_bounds = array<i64: 4, 8, 128>}, {transform_indices = @transform_3, window_bounds = array<i64: 1, 128>}]} {
    %c0 = arith.constant 0 : index
    %c0_0 = arith.constant 0 : index
    %0 = vector.load %arg1[%c0, %c0_0] : memref<6x128xf32, #tpu.memory_space<vmem>>, vector<6x128xf32>
    %c0_1 = arith.constant 0 : index
    %c0_2 = arith.constant 0 : index
    %c0_3 = arith.constant 0 : index
    %1 = vector.load %arg3[%c0_1, %c0_2, %c0_3] : memref<4x8x128xf32, #tpu.memory_space<vmem>>, vector<1x8x128xf32>
    %2 = vector.shape_cast %1 : vector<1x8x128xf32> to vector<8x128xf32>
    %c1 = arith.constant 1 : index
    %c0_4 = arith.constant 0 : index
    %c0_5 = arith.constant 0 : index
    %3 = vector.load %arg3[%c1, %c0_4, %c0_5] : memref<4x8x128xf32, #tpu.memory_space<vmem>>, vector<1x8x128xf32>
    %4 = vector.shape_cast %3 : vector<1x8x128xf32> to vector<8x128xf32>
    %c2 = arith.constant 2 : index
    %c0_6 = arith.constant 0 : index
    %c0_7 = arith.constant 0 : index
    %5 = vector.load %arg3[%c2, %c0_6, %c0_7] : memref<4x8x128xf32, #tpu.memory_space<vmem>>, vector<1x8x128xf32>
    %6 = vector.shape_cast %5 : vector<1x8x128xf32> to vector<8x128xf32>
    %c3 = arith.constant 3 : index
    %c0_8 = arith.constant 0 : index
    %c0_9 = arith.constant 0 : index
    %7 = vector.load %arg3[%c3, %c0_8, %c0_9] : memref<4x8x128xf32, #tpu.memory_space<vmem>>, vector<1x8x128xf32>
    %8 = vector.shape_cast %7 : vector<1x8x128xf32> to vector<8x128xf32>
    %c0_10 = arith.constant 0 : index
    %c0_11 = arith.constant 0 : index
    %c0_12 = arith.constant 0 : index
    %c0_13 = arith.constant 0 : index
    %9 = vector.load %arg2[%c0_10, %c0_11, %c0_12, %c0_13] : memref<7x6x8x128xf32, #tpu.memory_space<vmem>>, vector<1x6x8x128xf32>
    %10 = vector.shape_cast %9 : vector<1x6x8x128xf32> to vector<6x8x128xf32>
    %11 = vector.shape_cast %2 : vector<8x128xf32> to vector<1x8x128xf32>
    %12 = vector.broadcast %11 : vector<1x8x128xf32> to vector<6x8x128xf32>
    %13 = arith.subf %10, %12 : vector<6x8x128xf32>
    %14 = arith.mulf %13, %13 : vector<6x8x128xf32>
    %c1_14 = arith.constant 1 : index
    %c0_15 = arith.constant 0 : index
    %c0_16 = arith.constant 0 : index
    %c0_17 = arith.constant 0 : index
    %15 = vector.load %arg2[%c1_14, %c0_15, %c0_16, %c0_17] : memref<7x6x8x128xf32, #tpu.memory_space<vmem>>, vector<1x6x8x128xf32>
    %16 = vector.shape_cast %15 : vector<1x6x8x128xf32> to vector<6x8x128xf32>
    %17 = vector.shape_cast %4 : vector<8x128xf32> to vector<1x8x128xf32>
    %18 = vector.broadcast %17 : vector<1x8x128xf32> to vector<6x8x128xf32>
    %19 = arith.subf %16, %18 : vector<6x8x128xf32>
    %20 = arith.mulf %19, %19 : vector<6x8x128xf32>
    %21 = arith.addf %14, %20 : vector<6x8x128xf32>
    %c2_18 = arith.constant 2 : index
    %c0_19 = arith.constant 0 : index
    %c0_20 = arith.constant 0 : index
    %c0_21 = arith.constant 0 : index
    %22 = vector.load %arg2[%c2_18, %c0_19, %c0_20, %c0_21] : memref<7x6x8x128xf32, #tpu.memory_space<vmem>>, vector<1x6x8x128xf32>
    %23 = vector.shape_cast %22 : vector<1x6x8x128xf32> to vector<6x8x128xf32>
    %24 = vector.shape_cast %6 : vector<8x128xf32> to vector<1x8x128xf32>
    %25 = vector.broadcast %24 : vector<1x8x128xf32> to vector<6x8x128xf32>
    %26 = arith.subf %23, %25 : vector<6x8x128xf32>
    %27 = arith.mulf %26, %26 : vector<6x8x128xf32>
    %28 = arith.addf %21, %27 : vector<6x8x128xf32>
    %29 = math.sqrt %28 : vector<6x8x128xf32>
    %30 = vector.shape_cast %8 : vector<8x128xf32> to vector<1x8x128xf32>
    %31 = vector.broadcast %30 : vector<1x8x128xf32> to vector<6x8x128xf32>
    %32 = arith.mulf %29, %31 : vector<6x8x128xf32>
    %cst = arith.constant dense<0.000000e+00> : vector<6x128xf32>
    %33 = vector.multi_reduction <add>, %32, %cst [1] : vector<6x8x128xf32> to vector<6x128xf32>
    %cst_22 = arith.constant dense<0x7F800000> : vector<128xf32>
    %34 = vector.multi_reduction <minimumf>, %33, %cst_22 [0] : vector<6x128xf32> to vector<128xf32>
    %35 = vector.shape_cast %34 : vector<128xf32> to vector<1x128xf32>
    %36 = tpu.iota {dimensions = array<i32: 0>} : vector<6x128xi32>
    %37 = vector.broadcast %35 : vector<1x128xf32> to vector<6x128xf32>
    %38 = arith.cmpf ole, %33, %37 : vector<6x128xf32>
    %c6_i32 = arith.constant 6 : i32
    %39 = vector.broadcast %c6_i32 : i32 to vector<6x128xi32>
    %40 = arith.select %38, %36, %39 : vector<6x128xi1>, vector<6x128xi32>
    %cst_23 = arith.constant dense<2147483647> : vector<128xi32>
    %41 = vector.multi_reduction <minsi>, %40, %cst_23 [0] : vector<6x128xi32> to vector<128xi32>
    %42 = vector.shape_cast %41 : vector<128xi32> to vector<1x128xi32>
    %43 = vector.broadcast %42 : vector<1x128xi32> to vector<6x128xi32>
    %44 = arith.cmpi eq, %36, %43 : vector<6x128xi32>
    %45 = arith.extui %44 : vector<6x128xi1> to vector<6x128xi32>
    %46 = arith.sitofp %45 : vector<6x128xi32> to vector<6x128xf32>
    %c0_24 = arith.constant 0 : index
    %c0_25 = arith.constant 0 : index
    %c0_26 = arith.constant 0 : index
    %c0_27 = arith.constant 0 : index
    %47 = vector.load %arg2[%c0_24, %c0_25, %c0_26, %c0_27] : memref<7x6x8x128xf32, #tpu.memory_space<vmem>>, vector<1x6x8x128xf32>
    %48 = vector.shape_cast %47 : vector<1x6x8x128xf32> to vector<6x8x128xf32>
    %49 = vector.shape_cast %46 : vector<6x128xf32> to vector<6x1x128xf32>
    %50 = vector.broadcast %49 : vector<6x1x128xf32> to vector<6x8x128xf32>
    %51 = arith.mulf %48, %50 : vector<6x8x128xf32>
    %cst_28 = arith.constant dense<0.000000e+00> : vector<8x128xf32>
    %52 = vector.multi_reduction <add>, %51, %cst_28 [0] : vector<6x8x128xf32> to vector<8x128xf32>
    %c1_29 = arith.constant 1 : index
    %c0_30 = arith.constant 0 : index
    %c0_31 = arith.constant 0 : index
    %c0_32 = arith.constant 0 : index
    %53 = vector.load %arg2[%c1_29, %c0_30, %c0_31, %c0_32] : memref<7x6x8x128xf32, #tpu.memory_space<vmem>>, vector<1x6x8x128xf32>
    %54 = vector.shape_cast %53 : vector<1x6x8x128xf32> to vector<6x8x128xf32>
    %55 = vector.shape_cast %46 : vector<6x128xf32> to vector<6x1x128xf32>
    %56 = vector.broadcast %55 : vector<6x1x128xf32> to vector<6x8x128xf32>
    %57 = arith.mulf %54, %56 : vector<6x8x128xf32>
    %cst_33 = arith.constant dense<0.000000e+00> : vector<8x128xf32>
    %58 = vector.multi_reduction <add>, %57, %cst_33 [0] : vector<6x8x128xf32> to vector<8x128xf32>
    %c2_34 = arith.constant 2 : index
    %c0_35 = arith.constant 0 : index
    %c0_36 = arith.constant 0 : index
    %c0_37 = arith.constant 0 : index
    %59 = vector.load %arg2[%c2_34, %c0_35, %c0_36, %c0_37] : memref<7x6x8x128xf32, #tpu.memory_space<vmem>>, vector<1x6x8x128xf32>
    %60 = vector.shape_cast %59 : vector<1x6x8x128xf32> to vector<6x8x128xf32>
    %61 = vector.shape_cast %46 : vector<6x128xf32> to vector<6x1x128xf32>
    %62 = vector.broadcast %61 : vector<6x1x128xf32> to vector<6x8x128xf32>
    %63 = arith.mulf %60, %62 : vector<6x8x128xf32>
    %cst_38 = arith.constant dense<0.000000e+00> : vector<8x128xf32>
    %64 = vector.multi_reduction <add>, %63, %cst_38 [0] : vector<6x8x128xf32> to vector<8x128xf32>
    %c3_39 = arith.constant 3 : index
    %c0_40 = arith.constant 0 : index
    %c0_41 = arith.constant 0 : index
    %c0_42 = arith.constant 0 : index
    %65 = vector.load %arg2[%c3_39, %c0_40, %c0_41, %c0_42] : memref<7x6x8x128xf32, #tpu.memory_space<vmem>>, vector<1x6x8x128xf32>
    %66 = vector.shape_cast %65 : vector<1x6x8x128xf32> to vector<6x8x128xf32>
    %67 = vector.shape_cast %46 : vector<6x128xf32> to vector<6x1x128xf32>
    %68 = vector.broadcast %67 : vector<6x1x128xf32> to vector<6x8x128xf32>
    %69 = arith.mulf %66, %68 : vector<6x8x128xf32>
    %cst_43 = arith.constant dense<0.000000e+00> : vector<8x128xf32>
    %70 = vector.multi_reduction <add>, %69, %cst_43 [0] : vector<6x8x128xf32> to vector<8x128xf32>
    %cst_44 = arith.constant -1.609000e+00 : f32
    %cst_45 = arith.constant 5.000000e+00 : f32
    %71 = vector.broadcast %cst_44 : f32 to vector<8x128xf32>
    %72 = arith.maximumf %71, %70 : vector<8x128xf32>
    %73 = vector.broadcast %cst_45 : f32 to vector<8x128xf32>
    %74 = arith.minimumf %73, %72 : vector<8x128xf32>
    %c4 = arith.constant 4 : index
    %c0_46 = arith.constant 0 : index
    %c0_47 = arith.constant 0 : index
    %c0_48 = arith.constant 0 : index
    %75 = vector.load %arg2[%c4, %c0_46, %c0_47, %c0_48] : memref<7x6x8x128xf32, #tpu.memory_space<vmem>>, vector<1x6x8x128xf32>
    %76 = vector.shape_cast %75 : vector<1x6x8x128xf32> to vector<6x8x128xf32>
    %77 = vector.shape_cast %46 : vector<6x128xf32> to vector<6x1x128xf32>
    %78 = vector.broadcast %77 : vector<6x1x128xf32> to vector<6x8x128xf32>
    %79 = arith.mulf %76, %78 : vector<6x8x128xf32>
    %cst_49 = arith.constant dense<0.000000e+00> : vector<8x128xf32>
    %80 = vector.multi_reduction <add>, %79, %cst_49 [0] : vector<6x8x128xf32> to vector<8x128xf32>
    %cst_50 = arith.constant -1.609000e+00 : f32
    %cst_51 = arith.constant 5.000000e+00 : f32
    %81 = vector.broadcast %cst_50 : f32 to vector<8x128xf32>
    %82 = arith.maximumf %81, %80 : vector<8x128xf32>
    %83 = vector.broadcast %cst_51 : f32 to vector<8x128xf32>
    %84 = arith.minimumf %83, %82 : vector<8x128xf32>
    %c5 = arith.constant 5 : index
    %c0_52 = arith.constant 0 : index
    %c0_53 = arith.constant 0 : index
    %c0_54 = arith.constant 0 : index
    %85 = vector.load %arg2[%c5, %c0_52, %c0_53, %c0_54] : memref<7x6x8x128xf32, #tpu.memory_space<vmem>>, vector<1x6x8x128xf32>
    %86 = vector.shape_cast %85 : vector<1x6x8x128xf32> to vector<6x8x128xf32>
    %87 = vector.shape_cast %46 : vector<6x128xf32> to vector<6x1x128xf32>
    %88 = vector.broadcast %87 : vector<6x1x128xf32> to vector<6x8x128xf32>
    %89 = arith.mulf %86, %88 : vector<6x8x128xf32>
    %cst_55 = arith.constant dense<0.000000e+00> : vector<8x128xf32>
    %90 = vector.multi_reduction <add>, %89, %cst_55 [0] : vector<6x8x128xf32> to vector<8x128xf32>
    %cst_56 = arith.constant -1.609000e+00 : f32
    %cst_57 = arith.constant 5.000000e+00 : f32
    %91 = vector.broadcast %cst_56 : f32 to vector<8x128xf32>
    %92 = arith.maximumf %91, %90 : vector<8x128xf32>
    %93 = vector.broadcast %cst_57 : f32 to vector<8x128xf32>
    %94 = arith.minimumf %93, %92 : vector<8x128xf32>
    %c6 = arith.constant 6 : index
    %c0_58 = arith.constant 0 : index
    %c0_59 = arith.constant 0 : index
    %c0_60 = arith.constant 0 : index
    %95 = vector.load %arg2[%c6, %c0_58, %c0_59, %c0_60] : memref<7x6x8x128xf32, #tpu.memory_space<vmem>>, vector<1x6x8x128xf32>
    %96 = vector.shape_cast %95 : vector<1x6x8x128xf32> to vector<6x8x128xf32>
    %97 = vector.shape_cast %46 : vector<6x128xf32> to vector<6x1x128xf32>
    %98 = vector.broadcast %97 : vector<6x1x128xf32> to vector<6x8x128xf32>
    %99 = arith.mulf %96, %98 : vector<6x8x128xf32>
    %cst_61 = arith.constant dense<0.000000e+00> : vector<8x128xf32>
    %100 = vector.multi_reduction <add>, %99, %cst_61 [0] : vector<6x8x128xf32> to vector<8x128xf32>
    %cst_62 = arith.constant -5.000000e-01 : f32
    %cst_63 = arith.constant 5.000000e-01 : f32
    %101 = vector.broadcast %cst_62 : f32 to vector<8x128xf32>
    %102 = arith.maximumf %101, %100 : vector<8x128xf32>
    %103 = vector.broadcast %cst_63 : f32 to vector<8x128xf32>
    %104 = arith.minimumf %103, %102 : vector<8x128xf32>
    %105 = arith.subf %2, %52 : vector<8x128xf32>
    %106 = arith.subf %4, %58 : vector<8x128xf32>
    %107 = arith.subf %6, %64 : vector<8x128xf32>
    %cst_64 = arith.constant 0.000000e+00 : f32
    %108 = vector.broadcast %cst_64 : f32 to vector<8x128xf32>
    %109 = arith.subf %108, %74 : vector<8x128xf32>
    %110 = math.exp %109 : vector<8x128xf32>
    %cst_65 = arith.constant 0.000000e+00 : f32
    %111 = vector.broadcast %cst_65 : f32 to vector<8x128xf32>
    %112 = arith.subf %111, %84 : vector<8x128xf32>
    %113 = math.exp %112 : vector<8x128xf32>
    %cst_66 = arith.constant 0.000000e+00 : f32
    %114 = vector.broadcast %cst_66 : f32 to vector<8x128xf32>
    %115 = arith.subf %114, %94 : vector<8x128xf32>
    %116 = math.exp %115 : vector<8x128xf32>
    %117 = arith.mulf %104, %104 : vector<8x128xf32>
    %cst_67 = arith.constant 1.000000e+00 : f32
    %118 = vector.broadcast %cst_67 : f32 to vector<8x128xf32>
    %119 = arith.subf %118, %117 : vector<8x128xf32>
    %cst_68 = arith.constant 1.000000e+00 : f32
    %120 = vector.broadcast %cst_68 : f32 to vector<8x128xf32>
    %121 = arith.divf %120, %119 : vector<8x128xf32>
    %122 = arith.addf %74, %84 : vector<8x128xf32>
    %123 = math.log %119 : vector<8x128xf32>
    %cst_69 = arith.constant 5.000000e-01 : f32
    %124 = vector.broadcast %cst_69 : f32 to vector<8x128xf32>
    %125 = arith.mulf %124, %123 : vector<8x128xf32>
    %126 = arith.addf %122, %125 : vector<8x128xf32>
    %cst_70 = arith.constant 5.000000e-01 : f32
    %127 = vector.broadcast %cst_70 : f32 to vector<8x128xf32>
    %128 = arith.mulf %127, %121 : vector<8x128xf32>
    %129 = arith.mulf %105, %105 : vector<8x128xf32>
    %130 = arith.mulf %129, %110 : vector<8x128xf32>
    %131 = arith.mulf %130, %110 : vector<8x128xf32>
    %132 = arith.mulf %106, %106 : vector<8x128xf32>
    %133 = arith.mulf %132, %113 : vector<8x128xf32>
    %134 = arith.mulf %133, %113 : vector<8x128xf32>
    %135 = arith.addf %131, %134 : vector<8x128xf32>
    %cst_71 = arith.constant 2.000000e+00 : f32
    %136 = vector.broadcast %cst_71 : f32 to vector<8x128xf32>
    %137 = arith.mulf %136, %104 : vector<8x128xf32>
    %138 = arith.mulf %137, %105 : vector<8x128xf32>
    %139 = arith.mulf %138, %106 : vector<8x128xf32>
    %140 = arith.mulf %139, %110 : vector<8x128xf32>
    %141 = arith.mulf %140, %113 : vector<8x128xf32>
    %142 = arith.subf %135, %141 : vector<8x128xf32>
    %143 = arith.mulf %128, %142 : vector<8x128xf32>
    %144 = arith.mulf %107, %116 : vector<8x128xf32>
    %cst_72 = arith.constant 5.000000e-01 : f32
    %145 = vector.broadcast %cst_72 : f32 to vector<8x128xf32>
    %146 = arith.mulf %145, %144 : vector<8x128xf32>
    %147 = arith.mulf %146, %144 : vector<8x128xf32>
    %148 = arith.addf %126, %143 : vector<8x128xf32>
    %149 = arith.addf %148, %94 : vector<8x128xf32>
    %150 = arith.addf %149, %147 : vector<8x128xf32>
    %151 = arith.mulf %150, %8 : vector<8x128xf32>
    %cst_73 = arith.constant dense<0.000000e+00> : vector<128xf32>
    %152 = vector.multi_reduction <add>, %151, %cst_73 [0] : vector<8x128xf32> to vector<128xf32>
    %153 = vector.shape_cast %152 : vector<128xf32> to vector<1x128xf32>
    %cst_74 = arith.constant dense<0xFF800000> : vector<128xf32>
    %154 = vector.multi_reduction <maximumf>, %0, %cst_74 [0] : vector<6x128xf32> to vector<128xf32>
    %155 = vector.shape_cast %154 : vector<128xf32> to vector<1x128xf32>
    %156 = vector.broadcast %155 : vector<1x128xf32> to vector<6x128xf32>
    %157 = arith.subf %0, %156 : vector<6x128xf32>
    %158 = math.exp %157 : vector<6x128xf32>
    %cst_75 = arith.constant dense<0.000000e+00> : vector<128xf32>
    %159 = vector.multi_reduction <add>, %158, %cst_75 [0] : vector<6x128xf32> to vector<128xf32>
    %160 = vector.shape_cast %159 : vector<128xf32> to vector<1x128xf32>
    %161 = math.log %160 : vector<1x128xf32>
    %162 = arith.addf %161, %155 : vector<1x128xf32>
    %163 = arith.mulf %0, %46 : vector<6x128xf32>
    %cst_76 = arith.constant dense<0.000000e+00> : vector<128xf32>
    %164 = vector.multi_reduction <add>, %163, %cst_76 [0] : vector<6x128xf32> to vector<128xf32>
    %165 = vector.shape_cast %164 : vector<128xf32> to vector<1x128xf32>
    %166 = arith.subf %162, %165 : vector<1x128xf32>
    %167 = arith.addf %153, %166 : vector<1x128xf32>
    %c0_77 = arith.constant 0 : index
    %c0_78 = arith.constant 0 : index
    %168 = vector.load %arg4[%c0_77, %c0_78] : memref<1x128xf32, #tpu.memory_space<vmem>>, vector<1x128xf32>
    tpu.vector_store %arg4[%c0_77, %c0_78], %167 {strides = array<i32>} : memref<1x128xf32, #tpu.memory_space<vmem>>, vector<1x128xf32>,
    return
  }
  func.func @transform_0(%arg0: i32) -> (i32, i32) {
    %c0_i32 = arith.constant 0 : i32
    %c0_i32_0 = arith.constant 0 : i32
    return %c0_i32, %arg0 : i32, i32
  }
  func.func @transform_1(%arg0: i32) -> (i32, i32, i32, i32) {
    %c0_i32 = arith.constant 0 : i32
    %c0_i32_0 = arith.constant 0 : i32
    %c0_i32_1 = arith.constant 0 : i32
    %c0_i32_2 = arith.constant 0 : i32
    return %c0_i32, %c0_i32_0, %c0_i32_1, %arg0 : i32, i32, i32, i32
  }
  func.func @transform_2(%arg0: i32) -> (i32, i32, i32) {
    %c0_i32 = arith.constant 0 : i32
    %c0_i32_0 = arith.constant 0 : i32
    %c0_i32_1 = arith.constant 0 : i32
    return %c0_i32, %c0_i32_0, %arg0 : i32, i32, i32
  }
  func.func @transform_3(%arg0: i32) -> (i32, i32) {
    %c0_i32 = arith.constant 0 : i32
    %c0_i32_0 = arith.constant 0 : i32
    return %c0_i32, %arg0 : i32, i32
  }
}

</mosaic_0001>

<llo_original>
// kernel: criterion_loss.1
$region0: #{criterion_loss.1}
  #allocation0 [shape = 'u32[]', space=smem, size = 0x4, offset = 0x4, fixed_abs, tag = 'smem constant byte address 0x4 - core index']
  #allocation1 [shape = 'u32[72,128]{1,0:T(1,128)}', space=vmem, size = 0x9000, scoped, tag = 'internal scratch']
  %s0 = inlined_call_operand.vmem [shape: f32[6,128], index: 0, kind: input, shape index: {}]
  %s1 = inlined_call_operand.vmem [shape: f32[7,6,8,128], index: 1, kind: input, shape index: {}]
  %s2 = inlined_call_operand.vmem [shape: f32[4,8,128], index: 2, kind: input, shape index: {}]
  %s3 = inlined_call_operand.vmem [shape: f32[1,128], index: 3, kind: output, shape index: {}]
  %s4 = sld [smem:[#allocation0]]
  $region22: #{criterion_loss.1} parent=0
    _
  %s6 = ssub.s32 1, %s4
  %s7 = scalar_select 0, %s6, %s4
  // Predicated region
  $region2: #{criterion_loss.1} parent=0 // pred_check
    _
  $region3: #{criterion_loss.1} parent=0 // pred_check_branch
    %9 = sbr.rel (0) target = $region5
  $region4: #{criterion_loss.1} parent=0 // pred_region
    _
  $region5: #{criterion_loss.1} parent=0 // pred_fallthru
    _
  // Predicated region
  $region6: #{criterion_loss.1} parent=0 // pred_check
    _
  $region7: #{criterion_loss.1} parent=0 // pred_check_branch
    %11 = sbr.rel (0) target = $region9
  $region8: #{criterion_loss.1} parent=0 // pred_region
    _
  $region9: #{criterion_loss.1} parent=0 // pred_fallthru
    _
  // Predicated region
  $region10: #{criterion_loss.1} parent=0 // pred_check
    _
  $region11: #{criterion_loss.1} parent=0 // pred_check_branch
    %13 = sbr.rel (0) target = $region13
  $region12: #{criterion_loss.1} parent=0 // pred_region
    _
  $region13: #{criterion_loss.1} parent=0 // pred_fallthru
    _
  %v14 = vld [vmem:[%s0] sm:$0x3f]
  %v15 = vld [vmem:[%s2] sm:$0xff]
  %s16 = scalar_lea.vmem %s2, 8
  %v17 = vld [vmem:[%s16] sm:$0xff]
  %s18 = scalar_lea.vmem %s2, 16
  %v19 = vld [vmem:[%s18] sm:$0xff]
  %s20 = scalar_lea.vmem %s2, 24
  %v21 = vld [vmem:[%s20] sm:$0xff]
  %v22 = vld [vmem:[%s1] sm:$0xff]
  %v23 = vld [vmem:[%s1 + $0x8] sm:$0xff]
  %v24 = vld [vmem:[%s1 + $0x10] sm:$0xff]
  %v25 = vld [vmem:[%s1 + $0x18] sm:$0xff]
  %v26 = vld [vmem:[%s1 + $0x20] sm:$0xff]
  %v27 = vld [vmem:[%s1 + $0x28] sm:$0xff]
  %v28 = vsub.f32 %v22, %v15
  %v29 = vsub.f32 %v23, %v15
  %v30 = vsub.f32 %v24, %v15
  %v31 = vsub.f32 %v25, %v15
  %v32 = vsub.f32 %v26, %v15
  %v33 = vsub.f32 %v27, %v15
  %v34 = vmul.f32 %v28, %v28
  %v35 = vmul.f32 %v29, %v29
  %v36 = vmul.f32 %v30, %v30
  %v37 = vmul.f32 %v31, %v31
  %v38 = vmul.f32 %v32, %v32
  %v39 = vmul.f32 %v33, %v33
  %s40 = scalar_lea.vmem %s1, 48
  %v41 = vld [vmem:[%s40] sm:$0xff]
  %v42 = vld [vmem:[%s40 + $0x8] sm:$0xff]
  %v43 = vld [vmem:[%s40 + $0x10] sm:$0xff]
  %v44 = vld [vmem:[%s40 + $0x18] sm:$0xff]
  %v45 = vld [vmem:[%s40 + $0x20] sm:$0xff]
  %v46 = vld [vmem:[%s40 + $0x28] sm:$0xff]
  %v47 = vsub.f32 %v41, %v17
  %v48 = vsub.f32 %v42, %v17
  %v49 = vsub.f32 %v43, %v17
  %v50 = vsub.f32 %v44, %v17
  %v51 = vsub.f32 %v45, %v17
  %v52 = vsub.f32 %v46, %v17
  %v53 = vmul.f32 %v47, %v47
  %v54 = vmul.f32 %v48, %v48
  %v55 = vmul.f32 %v49, %v49
  %v56 = vmul.f32 %v50, %v50
  %v57 = vmul.f32 %v51, %v51
  %v58 = vmul.f32 %v52, %v52
  %v59 = vadd.f32 %v34, %v53
  %v60 = vadd.f32 %v35, %v54
  %v61 = vadd.f32 %v36, %v55
  %v62 = vadd.f32 %v37, %v56
  %v63 = vadd.f32 %v38, %v57
  %v64 = vadd.f32 %v39, %v58
  %s65 = scalar_lea.vmem %s1, 96
  %v66 = vld [vmem:[%s65] sm:$0xff]
  %v67 = vld [vmem:[%s65 + $0x8] sm:$0xff]
  %v68 = vld [vmem:[%s65 + $0x10] sm:$0xff]
  %v69 = vld [vmem:[%s65 + $0x18] sm:$0xff]
  %v70 = vld [vmem:[%s65 + $0x20] sm:$0xff]
  %v71 = vld [vmem:[%s65 + $0x28] sm:$0xff]
  %v72 = vsub.f32 %v66, %v19
  %v73 = vsub.f32 %v67, %v19
  %v74 = vsub.f32 %v68, %v19
  %v75 = vsub.f32 %v69, %v19
  %v76 = vsub.f32 %v70, %v19
  %v77 = vsub.f32 %v71, %v19
  %v78 = vmul.f32 %v72, %v72
  %v79 = vmul.f32 %v73, %v73
  %v80 = vmul.f32 %v74, %v74
  %v81 = vmul.f32 %v75, %v75
  %v82 = vmul.f32 %v76, %v76
  %v83 = vmul.f32 %v77, %v77
  %v84 = vadd.f32 %v59, %v78
  %v85 = vadd.f32 %v60, %v79
  %v86 = vadd.f32 %v61, %v80
  %v87 = vadd.f32 %v62, %v81
  %v88 = vadd.f32 %v63, %v82
  %v89 = vadd.f32 %v64, %v83
  %v90 = vrsqrt.pop %v84
  %v91 = vmul.f32 %v90, %v84
  %v92 = vmul.f32 %v91, %v90
  %v93 = vmul.f32 0.5, %v92
  %v94 = vsub.f32 1.5, %v93
  %v95 = vmul.f32 %v90, %v94
  %v96 = vmul.f32 %v84, %v95
  %vm97 = vcmp.eq.f32.partialorder %v84, inf
  %v98 = vsel %vm97, %v84, %v96
  %vm99 = vcmp.eq.f32.partialorder %v84, 0.0
  %v100 = vand.u32 %v84, 2147483648
  %v101 = vsel %vm99, %v100, %v98
  %v102 = vrsqrt.pop %v85
  %v103 = vmul.f32 %v102, %v85
  %v104 = vmul.f32 %v103, %v102
  %v105 = vmul.f32 0.5, %v104
  %v106 = vsub.f32 1.5, %v105
  %v107 = vmul.f32 %v102, %v106
  %v108 = vmul.f32 %v85, %v107
  %vm109 = vcmp.eq.f32.partialorder %v85, inf
  %v110 = vsel %vm109, %v85, %v108
  %vm111 = vcmp.eq.f32.partialorder %v85, 0.0
  %v112 = vand.u32 %v85, 2147483648
  %v113 = vsel %vm111, %v112, %v110
  %v114 = vrsqrt.pop %v86
  %v115 = vmul.f32 %v114, %v86
  %v116 = vmul.f32 %v115, %v114
  %v117 = vmul.f32 0.5, %v116
  %v118 = vsub.f32 1.5, %v117
  %v119 = vmul.f32 %v114, %v118
  %v120 = vmul.f32 %v86, %v119
  %vm121 = vcmp.eq.f32.partialorder %v86, inf
  %v122 = vsel %vm121, %v86, %v120
  %vm123 = vcmp.eq.f32.partialorder %v86, 0.0
  %v124 = vand.u32 %v86, 2147483648
  %v125 = vsel %vm123, %v124, %v122
  %v126 = vrsqrt.pop %v87
  %v127 = vmul.f32 %v126, %v87
  %v128 = vmul.f32 %v127, %v126
  %v129 = vmul.f32 0.5, %v128
  %v130 = vsub.f32 1.5, %v129
  %v131 = vmul.f32 %v126, %v130
  %v132 = vmul.f32 %v87, %v131
  %vm133 = vcmp.eq.f32.partialorder %v87, inf
  %v134 = vsel %vm133, %v87, %v132
  %vm135 = vcmp.eq.f32.partialorder %v87, 0.0
  %v136 = vand.u32 %v87, 2147483648
  %v137 = vsel %vm135, %v136, %v134
  %v138 = vrsqrt.pop %v88
  %v139 = vmul.f32 %v138, %v88
  %v140 = vmul.f32 %v139, %v138
  %v141 = vmul.f32 0.5, %v140
  %v142 = vsub.f32 1.5, %v141
  %v143 = vmul.f32 %v138, %v142
  %v144 = vmul.f32 %v88, %v143
  %vm145 = vcmp.eq.f32.partialorder %v88, inf
  %v146 = vsel %vm145, %v88, %v144
  %vm147 = vcmp.eq.f32.partialorder %v88, 0.0
  %v148 = vand.u32 %v88, 2147483648
  %v149 = vsel %vm147, %v148, %v146
  %v150 = vrsqrt.pop %v89
  %v151 = vmul.f32 %v150, %v89
  %v152 = vmul.f32 %v151, %v150
  %v153 = vmul.f32 0.5, %v152
  %v154 = vsub.f32 1.5, %v153
  %v155 = vmul.f32 %v150, %v154
  %v156 = vmul.f32 %v89, %v155
  %vm157 = vcmp.eq.f32.partialorder %v89, inf
  %v158 = vsel %vm157, %v89, %v156
  %vm159 = vcmp.eq.f32.partialorder %v89, 0.0
  %v160 = vand.u32 %v89, 2147483648
  %v161 = vsel %vm159, %v160, %v158
  %v162 = vmul.f32 %v101, %v21
  %v163 = vmul.f32 %v113, %v21
  %v164 = vmul.f32 %v125, %v21
  %v165 = vmul.f32 %v137, %v21
  %v166 = vmul.f32 %v149, %v21
  %v167 = vmul.f32 %v161, %v21
  %v168 = vrot.slane %v162, 4
  %v169 = vadd.f32 %v162, %v168
  %v170 = vrot.slane %v169, 2
  %v171 = vadd.f32 %v169, %v170
  %v172 = vrot.slane %v171, 1
  %v173 = vadd.f32 %v171, %v172
  %v174 = vrot.slane %v163, 4
  %v175 = vadd.f32 %v163, %v174
  %v176 = vrot.slane %v175, 2
  %v177 = vadd.f32 %v175, %v176
  %v178 = vrot.slane %v177, 1
  %v179 = vadd.f32 %v177, %v178
  %v180 = vrot.slane %v164, 4
  %v181 = vadd.f32 %v164, %v180
  %v182 = vrot.slane %v181, 2
  %v183 = vadd.f32 %v181, %v182
  %v184 = vrot.slane %v183, 1
  %v185 = vadd.f32 %v183, %v184
  %v186 = vrot.slane %v165, 4
  %v187 = vadd.f32 %v165, %v186
  %v188 = vrot.slane %v187, 2
  %v189 = vadd.f32 %v187, %v188
  %v190 = vrot.slane %v189, 1
  %v191 = vadd.f32 %v189, %v190
  %v192 = vrot.slane %v166, 4
  %v193 = vadd.f32 %v166, %v192
  %v194 = vrot.slane %v193, 2
  %v195 = vadd.f32 %v193, %v194
  %v196 = vrot.slane %v195, 1
  %v197 = vadd.f32 %v195, %v196
  %v198 = vrot.slane %v167, 4
  %v199 = vadd.f32 %v167, %v198
  %v200 = vrot.slane %v199, 2
  %v201 = vadd.f32 %v199, %v200
  %v202 = vrot.slane %v201, 1
  %v203 = vadd.f32 %v201, %v202
  %v204 = vmin.f32 %v173, %v197
  %v205 = vmin.f32 %v179, %v203
  %v206 = vmin.f32 %v204, %v205
  %v207 = vmin.f32 %v185, %v191
  %v208 = vmin.f32 %v206, %v207
  %v209 = vlaneseq
  %v210 = vshrl.u32 %v209, 7
  %vm211 = vcmp.le.f32.partialorder %v173, %v208
  %vm212 = vcmp.le.f32.partialorder %v179, %v208
  %vm213 = vcmp.le.f32.partialorder %v185, %v208
  %vm214 = vcmp.le.f32.partialorder %v191, %v208
  %vm215 = vcmp.le.f32.partialorder %v197, %v208
  %vm216 = vcmp.le.f32.partialorder %v203, %v208
  %v217 = vrot.slane %v210, 1
  %v218 = vrot.slane %v210, 2
  %v219 = vrot.slane %v210, 3
  %v220 = vrot.slane %v210, 4
  %v221 = vrot.slane %v210, 5
  %v222 = vsel %vm211, %v210, 6
  %v223 = vsel %vm212, %v217, 6
  %v224 = vsel %vm213, %v218, 6
  %v225 = vsel %vm214, %v219, 6
  %v226 = vsel %vm215, %v220, 6
  %v227 = vsel %vm216, %v221, 6
  %vm228 = vcmask 1040384
  %v229 = vsel %vm228, %v222, 2147483647
  %v230 = vsel %vm228, %v223, 2147483647
  %v231 = vsel %vm228, %v224, 2147483647
  %v232 = vsel %vm228, %v225, 2147483647
  %v233 = vsel %vm228, %v226, 2147483647
  %vm234 = vcmp.lt.s32.totalorder %v229, %v233
  %v235 = vsel %vm234, %v229, %v233
  %v236 = vsel %vm228, %v227, 2147483647
  %vm237 = vcmp.lt.s32.totalorder %v230, %v236
  %v238 = vsel %vm237, %v230, %v236
  %vm239 = vcmp.lt.s32.totalorder %v235, %v238
  %v240 = vsel %vm239, %v235, %v238
  %vm241 = vcmp.lt.s32.totalorder %v231, %v232
  %v242 = vsel %vm241, %v231, %v232
  %vm243 = vcmp.lt.s32.totalorder %v240, %v242
  %v244 = vsel %vm243, %v240, %v242
  %v245 = vperm.slane %v244, 0
  %vm246 = vcmp.eq.s32.totalorder %v210, %v245
  %v247 = vsel %vm246, 1, 0
  %v248 = vcvt.s32.f32 %v247
  %v250 = vrot.slane %v248, 1
  %v251 = vrot.slane %v248, 2
  %v252 = vrot.slane %v248, 3
  %v253 = vrot.slane %v248, 4
  %v254 = vrot.slane %v248, 5
  %v255 = vperm.slane %v248, 0
  %v256 = vperm.slane %v250, 0
  %v257 = vperm.slane %v251, 0
  %v258 = vperm.slane %v252, 0
  %v259 = vperm.slane %v253, 0
  %v260 = vperm.slane %v254, 0
  %v267 = vmul.f32 %v22, %v255
  %v268 = vmul.f32 %v23, %v256
  %v269 = vmul.f32 %v24, %v257
  %v270 = vmul.f32 %v25, %v258
  %v271 = vmul.f32 %v26, %v259
  %v272 = vmul.f32 %v27, %v260
  %v273 = vadd.f32 %v267, %v268
  %v274 = vadd.f32 %v273, %v269
  %v275 = vadd.f32 %v274, %v270
  %v276 = vadd.f32 %v275, %v271
  %v277 = vadd.f32 %v276, %v272
  %v278 = vmul.f32 %v41, %v255
  %v279 = vmul.f32 %v42, %v256
  %v280 = vmul.f32 %v43, %v257
  %v281 = vmul.f32 %v44, %v258
  %v282 = vmul.f32 %v45, %v259
  %v283 = vmul.f32 %v46, %v260
  %v284 = vadd.f32 %v278, %v279
  %v285 = vadd.f32 %v284, %v280
  %v286 = vadd.f32 %v285, %v281
  %v287 = vadd.f32 %v286, %v282
  %v288 = vadd.f32 %v287, %v283
  %v289 = vmul.f32 %v66, %v255
  %v290 = vmul.f32 %v67, %v256
  %v291 = vmul.f32 %v68, %v257
  %v292 = vmul.f32 %v69, %v258
  %v293 = vmul.f32 %v70, %v259
  %v294 = vmul.f32 %v71, %v260
  %v295 = vadd.f32 %v289, %v290
  %v296 = vadd.f32 %v295, %v291
  %v297 = vadd.f32 %v296, %v292
  %v298 = vadd.f32 %v297, %v293
  %v299 = vadd.f32 %v298, %v294
  %s300 = scalar_lea.vmem %s1, 144
  %v301 = vld [vmem:[%s300] sm:$0xff]
  %v302 = vld [vmem:[%s300 + $0x8] sm:$0xff]
  %v303 = vld [vmem:[%s300 + $0x10] sm:$0xff]
  %v304 = vld [vmem:[%s300 + $0x18] sm:$0xff]
  %v305 = vld [vmem:[%s300 + $0x20] sm:$0xff]
  %v306 = vld [vmem:[%s300 + $0x28] sm:$0xff]
  %v307 = vmul.f32 %v301, %v255
  %v308 = vmul.f32 %v302, %v256
  %v309 = vmul.f32 %v303, %v257
  %v310 = vmul.f32 %v304, %v258
  %v311 = vmul.f32 %v305, %v259
  %v312 = vmul.f32 %v306, %v260
  %v313 = vadd.f32 %v307, %v308
  %v314 = vadd.f32 %v313, %v309
  %v315 = vadd.f32 %v314, %v310
  %v316 = vadd.f32 %v315, %v311
  %v317 = vadd.f32 %v316, %v312
  %v318 = vmax.f32 %v317, -1.609
  %v319 = vmin.f32 %v318, 5.0
  %s320 = scalar_lea.vmem %s1, 192
  %v321 = vld [vmem:[%s320] sm:$0xff]
  %v322 = vld [vmem:[%s320 + $0x8] sm:$0xff]
  %v323 = vld [vmem:[%s320 + $0x10] sm:$0xff]
  %v324 = vld [vmem:[%s320 + $0x18] sm:$0xff]
  %v325 = vld [vmem:[%s320 + $0x20] sm:$0xff]
  %v326 = vld [vmem:[%s320 + $0x28] sm:$0xff]
  %v327 = vmul.f32 %v321, %v255
  %v328 = vmul.f32 %v322, %v256
  %v329 = vmul.f32 %v323, %v257
  %v330 = vmul.f32 %v324, %v258
  %v331 = vmul.f32 %v325, %v259
  %v332 = vmul.f32 %v326, %v260
  %v333 = vadd.f32 %v327, %v328
  %v334 = vadd.f32 %v333, %v329
  %v335 = vadd.f32 %v334, %v330
  %v336 = vadd.f32 %v335, %v331
  %v337 = vadd.f32 %v336, %v332
  %v338 = vmax.f32 %v337, -1.609
  %v339 = vmin.f32 %v338, 5.0
  %s340 = scalar_lea.vmem %s1, 240
  %v341 = vld [vmem:[%s340] sm:$0xff]
  %v342 = vld [vmem:[%s340 + $0x8] sm:$0xff]
  %v343 = vld [vmem:[%s340 + $0x10] sm:$0xff]
  %v344 = vld [vmem:[%s340 + $0x18] sm:$0xff]
  %v345 = vld [vmem:[%s340 + $0x20] sm:$0xff]
  %v346 = vld [vmem:[%s340 + $0x28] sm:$0xff]
  %v347 = vmul.f32 %v341, %v255
  %v348 = vmul.f32 %v342, %v256
  %v349 = vmul.f32 %v343, %v257
  %v350 = vmul.f32 %v344, %v258
  %v351 = vmul.f32 %v345, %v259
  %v352 = vmul.f32 %v346, %v260
  %v353 = vadd.f32 %v347, %v348
  %v354 = vadd.f32 %v353, %v349
  %v355 = vadd.f32 %v354, %v350
  %v356 = vadd.f32 %v355, %v351
  %v357 = vadd.f32 %v356, %v352
  %v358 = vmax.f32 %v357, -1.609
  %v359 = vmin.f32 %v358, 5.0
  %s360 = scalar_lea.vmem %s1, 288
  %v361 = vld [vmem:[%s360] sm:$0xff]
  %v362 = vld [vmem:[%s360 + $0x8] sm:$0xff]
  %v363 = vld [vmem:[%s360 + $0x10] sm:$0xff]
  %v364 = vld [vmem:[%s360 + $0x18] sm:$0xff]
  %v365 = vld [vmem:[%s360 + $0x20] sm:$0xff]
  %v366 = vld [vmem:[%s360 + $0x28] sm:$0xff]
  %v367 = vmul.f32 %v361, %v255
  %v368 = vmul.f32 %v362, %v256
  %v369 = vmul.f32 %v363, %v257
  %v370 = vmul.f32 %v364, %v258
  %v371 = vmul.f32 %v365, %v259
  %v372 = vmul.f32 %v366, %v260
  %v373 = vadd.f32 %v367, %v368
  %v374 = vadd.f32 %v373, %v369
  %v375 = vadd.f32 %v374, %v370
  %v376 = vadd.f32 %v375, %v371
  %v377 = vadd.f32 %v376, %v372
  %v378 = vmax.f32 %v377, -0.5
  %v379 = vmin.f32 %v378, 0.5
  %v380 = vsub.f32 %v15, %v277
  %v381 = vsub.f32 %v17, %v288
  %v382 = vsub.f32 %v19, %v299
  %v383 = vsub.f32 0.0, %v319
  %v384 = vmul.f32 %v383, 1.442695
  %v385 = vpow.pop %v384
  %v386 = vsub.f32 0.0, %v339
  %v387 = vmul.f32 %v386, 1.442695
  %v388 = vpow.pop %v387
  %v389 = vsub.f32 0.0, %v359
  %v390 = vmul.f32 %v389, 1.442695
  %v391 = vpow.pop %v390
  %v392 = vmul.f32 %v379, %v379
  %v393 = vsub.f32 1.0, %v392
  %v394 = vrcp.pop %v393
  %v395 = vmul.f32 %v393, %v394
  %v396 = vsub.f32 1.0, %v395
  %v397 = vmul.f32 %v394, %v396
  %v398 = vadd.f32 %v394, %v397
  %vm399 = vweird.f32 %v393
  %vm400 = vweird.f32 %v394
  %vm401 = vmor %vm399, %vm400
  %v402 = vsel %vm401, %v394, %v398
  %v403 = vand.u32 2147483647, %v393
  %vm404 = vcmp.eq.f32.partialorder %v403, 8.507059e+37
  %v405 = vand.u32 %v393, 2147483648
  %v406 = vor.u32 1.1754944e-38, %v405
  %v407 = vsel %vm404, %v406, %v402
  %v408 = vmul.f32 1.0, %v407
  %v409 = vadd.f32 %v319, %v339
  %v410 = vlog2.pop %v393
  %v411 = vmul.f32 %v410, 0.6931472
  %v412 = vmul.f32 %v411, 0.5
  %v413 = vadd.f32 %v409, %v412
  %v414 = vmul.f32 %v408, 0.5
  %v415 = vmul.f32 %v380, %v380
  %v416 = vmul.f32 %v415, %v385
  %v417 = vmul.f32 %v416, %v385
  %v418 = vmul.f32 %v381, %v381
  %v419 = vmul.f32 %v418, %v388
  %v420 = vmul.f32 %v419, %v388
  %v421 = vadd.f32 %v417, %v420
  %v422 = vmul.f32 %v379, 2.0
  %v423 = vmul.f32 %v422, %v380
  %v424 = vmul.f32 %v423, %v381
  %v425 = vmul.f32 %v424, %v385
  %v426 = vmul.f32 %v425, %v388
  %v427 = vsub.f32 %v421, %v426
  %v428 = vmul.f32 %v414, %v427
  %v429 = vmul.f32 %v382, %v391
  %v430 = vmul.f32 %v429, 0.5
  %v431 = vmul.f32 %v430, %v429
  %v432 = vadd.f32 %v413, %v428
  %v433 = vadd.f32 %v432, %v359
  %v434 = vadd.f32 %v433, %v431
  %v435 = vmul.f32 %v434, %v21
  %v436 = vrot.slane %v435, 4
  %v437 = vadd.f32 %v435, %v436
  %v438 = vrot.slane %v437, 2
  %v439 = vadd.f32 %v437, %v438
  %v440 = vrot.slane %v439, 1
  %v441 = vadd.f32 %v439, %v440
  %vm442 = vcmask 1045504
  %v443 = vsel %vm442, %v14, -inf
  %v444 = vrot.slane %v443, 4
  %v445 = vmax.f32 %v443, %v444
  %v446 = vrot.slane %v445, 2
  %v447 = vmax.f32 %v445, %v446
  %v448 = vrot.slane %v447, 1
  %v449 = vmax.f32 %v447, %v448
  %v450 = vsub.f32 %v14, %v449
  %v451 = vmul.f32 %v450, 1.442695
  %v452 = vpow.pop %v451
  %v453 = vsel %vm442, %v452, 0.0
  %v454 = vrot.slane %v453, 4
  %v455 = vadd.f32 %v453, %v454
  %v456 = vrot.slane %v455, 2
  %v457 = vadd.f32 %v455, %v456
  %v458 = vrot.slane %v457, 1
  %v459 = vadd.f32 %v457, %v458
  %v460 = vlog2.pop %v459
  %v461 = vmul.f32 %v460, 0.6931472
  %v462 = vadd.f32 %v461, %v449
  %v463 = vmul.f32 %v14, %v248
  %v464 = vsel %vm442, %v463, 0.0
  %v465 = vrot.slane %v464, 4
  %v466 = vadd.f32 %v464, %v465
  %v467 = vrot.slane %v466, 2
  %v468 = vadd.f32 %v466, %v467
  %v469 = vrot.slane %v468, 1
  %v470 = vadd.f32 %v468, %v469
  %v471 = vsub.f32 %v462, %v470
  %v472 = vadd.f32 %v441, %v471
  %473 = vst [vmem:[%s3] sm:$0x1] %v472
  // Predicated region
  $region14: #{criterion_loss.1} parent=0 // pred_check
    _
  $region15: #{criterion_loss.1} parent=0 // pred_check_branch
    %475 = sbr.rel (0) target = $region17
  $region16: #{criterion_loss.1} parent=0 // pred_region
    _
  $region17: #{criterion_loss.1} parent=0 // pred_fallthru
    _
  // Predicated region
  $region18: #{criterion_loss.1} parent=0 // pred_check
    _
  $region19: #{criterion_loss.1} parent=0 // pred_check_branch
    %477 = sbr.rel (0) target = $region21
  $region20: #{criterion_loss.1} parent=0 // pred_region
    _
  $region21: #{criterion_loss.1} parent=0 // pred_fallthru
    _

</llo_original>
